<compile_context>
chip_gen: v7x
topology: tpu7x:2x2x1
jax: 0.10.0
libtpu: 0.0.40
codegen_flags: <defaults>
</compile_context>

<pallas_src>
import jax
import jax.numpy as jnp
from jax.experimental import pallas as pl
from jax.experimental.pallas import tpu as pltpu

PART = 6
BN_EPS = 1e-5


def _round_up(n, m):
    return -(-n // m) * m


def pcb_cls_kernel(pooled_ref, w_ref, b_ref, score_ref):
    # pooled_ref: (BT, C) f32   w_ref: (C, Npad) f32   b_ref: (1, Npad) f32
    # BatchNorm1d (eval) is pre-folded into (w, b); f32 MXU matmul.
    score_ref[...] = (
        jnp.dot(pooled_ref[...], w_ref[...], preferred_element_type=jnp.float32)
        + b_ref[...]
    )


def pcb_dense_head(x, gamma, beta, run_mean, run_var, w_cls):
    """x: (B, C, H, W) backbone features.  Returns (y, z) like PCB_dense.forward.

    y: list of 6 (B, class_num) logits.   z: (B, C * 6) flattened pooled features.
    """
    B, C, H, W = x.shape
    assert H % PART == 0, "AdaptiveAvgPool2d((6,1)) reproduced only for H % 6 == 0"
    hbin = H // PART
    N = w_cls.shape[-1]
    Npad = _round_up(N, 128)

    # ---- average pool as one fused XLA reduce in native NCHW layout ----------
    # Single HBM pass over x; output is only (B, C, 6) f32.
    pooled = jnp.mean(x.reshape(B, C, PART, hbin * W), axis=-1,
                      dtype=jnp.float32)                              # (B, C, 6)
    z = pooled.reshape(B, C * PART)                                   # dropout(eval)=id

    # ---- fold BatchNorm1d (eval) into the bias-free classifier ---------------
    inv = gamma * jax.lax.rsqrt(run_var + BN_EPS)                     # (PART, C)
    w_fold = inv[:, :, None] * w_cls                                  # (PART, C, N)
    b_fold = jnp.einsum("pc,pcn->pn", beta - run_mean * inv, w_cls)   # (PART, N)
    w_fold = jnp.pad(w_fold, ((0, 0), (0, 0), (0, Npad - N))).astype(jnp.float32)
    b_fold = jnp.pad(b_fold, ((0, 0), (0, Npad - N)))[:, None, :].astype(jnp.float32)

    # ---- per-part classifier matmul in Pallas ---------------------------------
    BT = min(128, _round_up(B, 8))          # sublane-aligned batch tile, <= 128
    Bp = _round_up(B, BT)
    pooled_p = jnp.transpose(pooled, (2, 0, 1)).astype(jnp.float32)   # (PART, B, C)
    if Bp != B:
        pooled_p = jnp.pad(pooled_p, ((0, 0), (0, Bp - B), (0, 0)))

    blk_bytes = 4 * (C * Npad + BT * C + Npad + BT * Npad)
    vmem_limit = int(min(max(2 * blk_bytes + (2 << 20), 16 << 20), 64 << 20))

    scores = pl.pallas_call(
        pcb_cls_kernel,
        out_shape=jax.ShapeDtypeStruct((PART, Bp, Npad), jnp.float32),
        grid_spec=pltpu.PrefetchScalarGridSpec(
            num_scalar_prefetch=0,
            grid=(PART, Bp // BT),
            in_specs=[
                pl.BlockSpec((None, BT, C), lambda p, b: (p, b, 0)),     # pooled
                pl.BlockSpec((None, C, Npad), lambda p, b: (p, 0, 0)),   # folded W
                pl.BlockSpec((None, 1, Npad), lambda p, b: (p, 0, 0)),   # folded bias
            ],
            out_specs=pl.BlockSpec((None, BT, Npad), lambda p, b: (p, b, 0)),
        ),
        compiler_params=pltpu.CompilerParams(
            dimension_semantics=("parallel", "parallel"),
            vmem_limit_bytes=vmem_limit,
        ),
    )(pooled_p, w_fold, b_fold)

    # Glue matching the PyTorch forward:
    #   y = [classifier_i(squeeze(x[:, :, i])) for i in range(6)]
    #   z = feats.view(B, -1)
    y = [scores[i, :B, :N] for i in range(PART)]
    return y, z


if __name__ == "__main__":
    key = jax.random.PRNGKey(0)
    B, C, H, W = 2, 32, 24, 8           # small stand-in for real (B, 1024, 24, 8)
    class_num = 16
    k_x, k_w = jax.random.split(key)

    # Backbone feature map (stand-in for densenet121.features output).
    x = jax.random.normal(k_x, (B, C, H, W), dtype=jnp.float32)

    # BatchNorm1d (weights_init_kaiming): weight=1, bias=0; running stats (0, 1).
    gamma = jnp.ones((PART, C), jnp.float32)
    beta = jnp.zeros((PART, C), jnp.float32)
    run_mean = jnp.zeros((PART, C), jnp.float32)
    run_var = jnp.ones((PART, C), jnp.float32)
    # Linear(C, class_num, bias=False) with weight ~ N(0, 0.001); stored (C, N).
    w_cls = 0.001 * jax.random.normal(k_w, (PART, C, class_num), dtype=jnp.float32)

    y, z = jax.jit(pcb_dense_head)(x, gamma, beta, run_mean, run_var, w_cls)
    jax.block_until_ready(z)
    for t in y:
        jax.block_until_ready(t)

    # Pure f32 reference mirroring PCB_dense.forward (eval mode).
    pooled_ref = x.reshape(B, C, PART, H // PART, W).mean(axis=(3, 4))   # (B, C, 6)
    z_ref = pooled_ref.reshape(B, C * PART)
    assert jnp.allclose(z, z_ref, atol=1e-5, rtol=1e-5), "pooled/z mismatch"

    inv_ref = gamma * jax.lax.rsqrt(run_var + BN_EPS)
    for i in range(PART):
        feat = inv_ref[i] * (pooled_ref[:, :, i] - run_mean[i]) + beta[i]
        ref_i = feat @ w_cls[i]
        assert jnp.allclose(y[i], ref_i, atol=5e-5, rtol=5e-2), f"scores mismatch (part {i})"

    print("KERNEL_OK")
</pallas_src>

<mosaic_0001>
module attributes {stable_mosaic.version = 11 : i64} {
  func.func @pcb_cls_kernel(%arg0: i32, %arg1: i32, %arg2: memref<1x8x32xf32, #tpu.memory_space<vmem>>, %arg3: memref<1x32x128xf32, #tpu.memory_space<vmem>>, %arg4: memref<1x1x128xf32, #tpu.memory_space<vmem>>, %arg5: memref<1x8x128xf32, #tpu.memory_space<vmem>>) attributes {dimension_semantics = [#tpu.dimension_semantics<parallel>, #tpu.dimension_semantics<parallel>], iteration_bounds = array<i64: 6, 1>, scalar_prefetch = 0 : i64, scratch_operands = 0 : i64, tpu.core_type = #tpu.core_type<tc>, window_params = [{transform_indices = @transform_0, window_bounds = array<i64: 1, 8, 32>}, {transform_indices = @transform_1, window_bounds = array<i64: 1, 32, 128>}, {transform_indices = @transform_2, window_bounds = array<i64: 1, 1, 128>}, {transform_indices = @transform_3, window_bounds = array<i64: 1, 8, 128>}]} {
    %c0 = arith.constant 0 : index
    %c0_0 = arith.constant 0 : index
    %c0_1 = arith.constant 0 : index
    %0 = vector.load %arg2[%c0, %c0_0, %c0_1] : memref<1x8x32xf32, #tpu.memory_space<vmem>>, vector<1x8x32xf32>
    %1 = vector.shape_cast %0 : vector<1x8x32xf32> to vector<8x32xf32>
    %c0_2 = arith.constant 0 : index
    %c0_3 = arith.constant 0 : index
    %c0_4 = arith.constant 0 : index
    %2 = vector.load %arg3[%c0_2, %c0_3, %c0_4] : memref<1x32x128xf32, #tpu.memory_space<vmem>>, vector<1x32x128xf32>
    %3 = vector.shape_cast %2 : vector<1x32x128xf32> to vector<32x128xf32>
    %cst = arith.constant dense<0.000000e+00> : vector<8x128xf32>
    %4 = tpu.matmul %1, %3, %cst {dimension_numbers = #tpu.dot_dimension_numbers<[1], [0], [0], [1], [0, 0, 1, 1], [], []>} : vector<8x32xf32>, vector<32x128xf32>, vector<8x128xf32> -> vector<8x128xf32>
    %c0_5 = arith.constant 0 : index
    %c0_6 = arith.constant 0 : index
    %c0_7 = arith.constant 0 : index
    %5 = vector.load %arg4[%c0_5, %c0_6, %c0_7] : memref<1x1x128xf32, #tpu.memory_space<vmem>>, vector<1x1x128xf32>
    %6 = vector.shape_cast %5 : vector<1x1x128xf32> to vector<1x128xf32>
    %7 = vector.broadcast %6 : vector<1x128xf32> to vector<8x128xf32>
    %8 = arith.addf %4, %7 : vector<8x128xf32>
    %c0_8 = arith.constant 0 : index
    %c0_9 = arith.constant 0 : index
    %c0_10 = arith.constant 0 : index
    %9 = vector.load %arg5[%c0_8, %c0_9, %c0_10] : memref<1x8x128xf32, #tpu.memory_space<vmem>>, vector<1x8x128xf32>
    %10 = vector.shape_cast %9 : vector<1x8x128xf32> to vector<8x128xf32>
    %11 = vector.shape_cast %8 : vector<8x128xf32> to vector<1x8x128xf32>
    tpu.vector_store %arg5[%c0_8, %c0_9, %c0_10], %11 {strides = array<i32>} : memref<1x8x128xf32, #tpu.memory_space<vmem>>, vector<1x8x128xf32>,
    return
  }
  func.func @transform_0(%arg0: i32, %arg1: i32) -> (i32, i32, i32) {
    %c0_i32 = arith.constant 0 : i32
    %c0_i32_0 = arith.constant 0 : i32
    return %arg0, %arg1, %c0_i32 : i32, i32, i32
  }
  func.func @transform_1(%arg0: i32, %arg1: i32) -> (i32, i32, i32) {
    %c0_i32 = arith.constant 0 : i32
    %c0_i32_0 = arith.constant 0 : i32
    %c0_i32_1 = arith.constant 0 : i32
    return %arg0, %c0_i32, %c0_i32_0 : i32, i32, i32
  }
  func.func @transform_2(%arg0: i32, %arg1: i32) -> (i32, i32, i32) {
    %c0_i32 = arith.constant 0 : i32
    %c0_i32_0 = arith.constant 0 : i32
    %c0_i32_1 = arith.constant 0 : i32
    return %arg0, %c0_i32, %c0_i32_0 : i32, i32, i32
  }
  func.func @transform_3(%arg0: i32, %arg1: i32) -> (i32, i32, i32) {
    %c0_i32 = arith.constant 0 : i32
    %c0_i32_0 = arith.constant 0 : i32
    return %arg0, %arg1, %c0_i32 : i32, i32, i32
  }
}

</mosaic_0001>

<llo_original>
// kernel: pcb_dense_head.1
$region0: #{pcb_dense_head.1}
  #allocation0 [shape = 'u32[]', space=smem, size = 0x4, offset = 0x4, fixed_abs, tag = 'smem constant byte address 0x4 - core index']
  #allocation1 [shape = 'u32[144,128]{1,0:T(1,128)}', space=vmem, size = 0x12000, scoped, tag = 'internal scratch']
  %s0 = inlined_call_operand.vmem [shape: f32[6,8,32], index: 0, kind: input, shape index: {}]
  %s1 = inlined_call_operand.vmem [shape: f32[6,32,128], index: 1, kind: input, shape index: {}]
  %s2 = inlined_call_operand.vmem [shape: f32[6,1,128], index: 2, kind: input, shape index: {}]
  %s3 = inlined_call_operand.vmem [shape: f32[6,8,128], index: 3, kind: output, shape index: {}]
  %s4 = sld [smem:[#allocation0]]
  $region45: #{pcb_dense_head.1} parent=0
    _
  %s6 = ssub.s32 1, %s4
  %s7 = scalar_select 0, %s6, %s4
  loop: start=0, step=1, limit=8
  $region2: #{pcb_dense_head.1} parent=0 // loop_pre_header
    _
  $region3: #{pcb_dense_head.1} parent=0 // loop_header
    %s9 = sphi 0, %s13
    %p10 = scmp.ge.s32.totalorder %s9, 8
    %s16 = sphi 0, %s28
    %s17 = sphi 0, %s24
    %s18 = sphi 0, %s16
    %s19 = sphi 0, %s17
    %s20 = sphi 0, %s18
    %s21 = sphi 0, %s19
    %s33 = sphi 0, %s35
    %s36 = sphi 0, %s33
    %s37 = sphi 0, %s36
    %s53 = sphi 0, %s37
    %s59 = sphi 0, %s61
    %s62 = sphi 0, %s59
    %s63 = sphi 0, %s62
    %s79 = sphi 0, %s63
    %s85 = sphi 0, %s87
    %s88 = sphi 0, %s85
    %s89 = sphi 0, %s88
    %s105 = sphi 0, %s89
    %s113 = sphi 0, %s115
    %s116 = sphi 0, %s113
    %s117 = sphi 0, %s116
    %s133 = sphi 0, %s117
  $region4: #{pcb_dense_head.1} parent=0 // loop_header_branch
    %12 = sbr.rel (%p10) target = $region8
  $region5: #{pcb_dense_head.1} parent=0 // loop_body
    %s14 = ssub.s32 %s9, 1
    %s15 = ssub.s32 %s9, 2
    %s22 = sadd.s32 1, %s17
    %p23 = scmp.ge.s32.totalorder %s22, 1
    %s24 = scalar_select %p23, 0, %s22
    %s25 = sadd.s32 1, %s16
    %s26 = scalar_select %p23, %s25, %s16
    %p27 = scmp.ge.s32.totalorder %s26, 6
    %s28 = scalar_select %p27, 0, %s26
    %s29 = ssub.s32 %s16, %s28
    %s30 = ssub.s32 %s17, %s24
    %s31 = sor.u32 %s29, %s30
    %p32 = scmp.eq.s32.totalorder %s31, 0
    %s34 = sadd.s32 %s33, 1
    %s35 = scalar_select %p32, %s33, %s34
    %p38 = pneg %p32
    %p39 = scmp.eq.s32.totalorder %s9, 5
    %p40 = por %p38, %p39
    %p41 = scmp.ne.s32.totalorder %s33, %s36
    %p42 = scmp.eq.s32.totalorder %s9, 0
    %p43 = por %p41, %p42
    %p44 = scmp.ne.s32.totalorder %s33, %s36
    %p45 = scmp.eq.s32.totalorder %s14, 5
    %p46 = por %p44, %p45
    %p47 = scmp.ne.s32.totalorder %s36, %s37
    %p48 = scmp.eq.s32.totalorder %s14, 0
    %p49 = por %p47, %p48
    %p50 = scmp.ne.s32.totalorder %s36, %s37
    %p51 = scmp.eq.s32.totalorder %s15, 5
    %p52 = por %p50, %p51
    %p54 = scmp.ne.s32.totalorder %s37, %s53
    %p55 = scmp.eq.s32.totalorder %s15, 0
    %p56 = por %p54, %p55
    %s57 = ssub.s32 %s16, %s28
    %p58 = scmp.eq.s32.totalorder %s57, 0
    %s60 = sadd.s32 %s59, 1
    %s61 = scalar_select %p58, %s59, %s60
    %p64 = pneg %p58
    %p65 = scmp.eq.s32.totalorder %s9, 5
    %p66 = por %p64, %p65
    %p67 = scmp.ne.s32.totalorder %s59, %s62
    %p68 = scmp.eq.s32.totalorder %s9, 0
    %p69 = por %p67, %p68
    %p70 = scmp.ne.s32.totalorder %s59, %s62
    %p71 = scmp.eq.s32.totalorder %s14, 5
    %p72 = por %p70, %p71
    %p73 = scmp.ne.s32.totalorder %s62, %s63
    %p74 = scmp.eq.s32.totalorder %s14, 0
    %p75 = por %p73, %p74
    %p76 = scmp.ne.s32.totalorder %s62, %s63
    %p77 = scmp.eq.s32.totalorder %s15, 5
    %p78 = por %p76, %p77
    %p80 = scmp.ne.s32.totalorder %s63, %s79
    %p81 = scmp.eq.s32.totalorder %s15, 0
    %p82 = por %p80, %p81
    %s83 = ssub.s32 %s16, %s28
    %p84 = scmp.eq.s32.totalorder %s83, 0
    %s86 = sadd.s32 %s85, 1
    %s87 = scalar_select %p84, %s85, %s86
    %p90 = pneg %p84
    %p91 = scmp.eq.s32.totalorder %s9, 5
    %p92 = por %p90, %p91
    %p93 = scmp.ne.s32.totalorder %s85, %s88
    %p94 = scmp.eq.s32.totalorder %s9, 0
    %p95 = por %p93, %p94
    %p96 = scmp.ne.s32.totalorder %s85, %s88
    %p97 = scmp.eq.s32.totalorder %s14, 5
    %p98 = por %p96, %p97
    %p99 = scmp.ne.s32.totalorder %s88, %s89
    %p100 = scmp.eq.s32.totalorder %s14, 0
    %p101 = por %p99, %p100
    %p102 = scmp.ne.s32.totalorder %s88, %s89
    %p103 = scmp.eq.s32.totalorder %s15, 5
    %p104 = por %p102, %p103
    %p106 = scmp.ne.s32.totalorder %s89, %s105
    %p107 = scmp.eq.s32.totalorder %s15, 0
    %p108 = por %p106, %p107
    %s109 = ssub.s32 %s16, %s28
    %s110 = ssub.s32 %s17, %s24
    %s111 = sor.u32 %s109, %s110
    %p112 = scmp.eq.s32.totalorder %s111, 0
    %s114 = sadd.s32 %s113, 1
    %s115 = scalar_select %p112, %s113, %s114
    %p118 = pneg %p112
    %p119 = scmp.eq.s32.totalorder %s9, 5
    %p120 = por %p118, %p119
    %p121 = scmp.ne.s32.totalorder %s113, %s116
    %p122 = scmp.eq.s32.totalorder %s9, 0
    %p123 = por %p121, %p122
    %p124 = scmp.ne.s32.totalorder %s113, %s116
    %p125 = scmp.eq.s32.totalorder %s14, 5
    %p126 = por %p124, %p125
    %p127 = scmp.ne.s32.totalorder %s116, %s117
    %p128 = scmp.eq.s32.totalorder %s14, 0
    %p129 = por %p127, %p128
    %p130 = scmp.ne.s32.totalorder %s116, %s117
    %p131 = scmp.eq.s32.totalorder %s15, 5
    %p132 = por %p130, %p131
    %p134 = scmp.ne.s32.totalorder %s117, %s133
    %p135 = scmp.eq.s32.totalorder %s15, 0
    %p136 = por %p134, %p135
    %p137 = scmp.le.s32.totalorder 1, %s9
    %p138 = scmp.lt.s32.totalorder %s9, 7
    %p139 = pnand %p137, %p138
    %p140 = pneg %p139
    // Predicated region
    $region9: #{pcb_dense_head.1} parent=5 // pred_check
      _
    $region10: #{pcb_dense_head.1} parent=5 // pred_check_branch
      %142 = sbr.rel (%p139) target = $region12
    $region11: #{pcb_dense_head.1} parent=5 // pred_region
      %s143 = ssub.s32 %s9, 1
    $region12: #{pcb_dense_head.1} parent=5 // pred_fallthru
      _
    %p144 = scmp.lt.s32.totalorder %s9, 6
    // Predicated region
    $region13: #{pcb_dense_head.1} parent=5 // pred_check
      %p145 = pneg %p144
    $region14: #{pcb_dense_head.1} parent=5 // pred_check_branch
      %147 = sbr.rel (%p145) target = $region16
    $region15: #{pcb_dense_head.1} parent=5 // pred_region
      // Predicated region
      $region17: #{pcb_dense_head.1} parent=15 // pred_check
        %p148 = pneg %p43
      $region18: #{pcb_dense_head.1} parent=15 // pred_check_branch
        %150 = sbr.rel (%p148) target = $region20
      $region19: #{pcb_dense_head.1} parent=15 // pred_region
        %p151 = scmp.lt.s32.totalorder %s16, 5
        %s152 = scalar_select %p151, %s16, 5
        %p153 = scmp.lt.s32.totalorder %s17, 0
        %s154 = scalar_select %p153, %s17, 0
        %s155 = sadd.s32 %s154, %s152
        %s156 = smul.addr %s155, 8
        %s157 = scalar_lea.vmem %s0, %s156
      $region20: #{pcb_dense_head.1} parent=15 // pred_fallthru
        _
      // Predicated region
      $region21: #{pcb_dense_head.1} parent=15 // pred_check
        %p158 = pneg %p69
      $region22: #{pcb_dense_head.1} parent=15 // pred_check_branch
        %160 = sbr.rel (%p158) target = $region24
      $region23: #{pcb_dense_head.1} parent=15 // pred_region
        %p161 = scmp.lt.s32.totalorder %s16, 5
        %s162 = scalar_select %p161, %s16, 5
        %s163 = smul.addr %s162, 4
        %s164 = smul.addr %s163, 8
        %s165 = scalar_lea.vmem %s1, %s164
      $region24: #{pcb_dense_head.1} parent=15 // pred_fallthru
        _
      // Predicated region
      $region25: #{pcb_dense_head.1} parent=15 // pred_check
        %p166 = pneg %p95
      $region26: #{pcb_dense_head.1} parent=15 // pred_check_branch
        %168 = sbr.rel (%p166) target = $region28
      $region27: #{pcb_dense_head.1} parent=15 // pred_region
        %p169 = scmp.lt.s32.totalorder %s16, 5
        %s170 = scalar_select %p169, %s16, 5
        %s171 = scalar_lea.vmem %s2, %s170
      $region28: #{pcb_dense_head.1} parent=15 // pred_fallthru
        _
    $region16: #{pcb_dense_head.1} parent=5 // pred_fallthru
      _
    %p172 = scmp.le.s32.totalorder 1, %s9
    %p173 = scmp.lt.s32.totalorder %s9, 7
    %p174 = pnand %p172, %p173
    %p175 = pneg %p174
    // Predicated region
    $region29: #{pcb_dense_head.1} parent=5 // pred_check
      _
    $region30: #{pcb_dense_head.1} parent=5 // pred_check_branch
      %177 = sbr.rel (%p174) target = $region32
    $region31: #{pcb_dense_head.1} parent=5 // pred_region
      %s178 = ssub.s32 %s9, 1
      %p179 = scmp.lt.s32.totalorder %s18, 5
      %s180 = scalar_select %p179, %s18, 5
      %p181 = scmp.lt.s32.totalorder %s19, 0
      %s182 = scalar_select %p181, %s19, 0
      %s183 = sadd.s32 %s182, %s180
      %s184 = smul.addr %s183, 8
      %s185 = scalar_lea.vmem %s0, %s184
      %p186 = pneg %p49
      %p187 = pneg %p46
      %p188 = scmp.lt.s32.totalorder %s18, 5
      %s189 = scalar_select %p188, %s18, 5
      %s190 = smul.addr %s189, 4
      %s191 = smul.addr %s190, 8
      %s192 = scalar_lea.vmem %s1, %s191
      %p193 = pneg %p75
      %p194 = pneg %p72
      %p195 = scmp.lt.s32.totalorder %s18, 5
      %s196 = scalar_select %p195, %s18, 5
      %s197 = scalar_lea.vmem %s2, %s196
      %p198 = pneg %p101
      %p199 = pneg %p98
      %p200 = pneg %p129
      %p201 = pneg %p126
      %p202 = scmp.lt.s32.totalorder %s18, 5
      %s203 = scalar_select %p202, %s18, 5
      %p204 = scmp.lt.s32.totalorder %s19, 0
      %s205 = scalar_select %p204, %s19, 0
      %s206 = sadd.s32 %s205, %s203
      %s207 = smul.addr %s206, 8
      %s208 = scalar_lea.vmem %s3, %s207
      %p209 = scmp.lt.s32.totalorder %s18, 5
      %s210 = scalar_select %p209, %s18, 5
      %p211 = scmp.lt.s32.totalorder %s19, 0
      %s212 = scalar_select %p211, %s19, 0
      %s213 = sadd.s32 %s212, %s210
      %s214 = smul.addr %s213, 8
      %s215 = scalar_lea.vmem %s0, %s214
      %p216 = scmp.lt.s32.totalorder %s18, 5
      %s217 = scalar_select %p216, %s18, 5
      %s218 = smul.addr %s217, 4
      %s219 = smul.addr %s218, 8
      %s220 = scalar_lea.vmem %s1, %s219
      %p221 = scmp.lt.s32.totalorder %s18, 5
      %s222 = scalar_select %p221, %s18, 5
      %s223 = scalar_lea.vmem %s2, %s222
      %p224 = scmp.lt.s32.totalorder %s18, 5
      %s225 = scalar_select %p224, %s18, 5
      %p226 = scmp.lt.s32.totalorder %s19, 0
      %s227 = scalar_select %p226, %s19, 0
      %s228 = sadd.s32 %s227, %s225
      %s229 = smul.addr %s228, 8
      %s230 = scalar_lea.vmem %s3, %s229
      %v231 = vld [vmem:[%s215] sm:$0xff]
      %v232 = vld [vmem:[%s220] sm:$0xff]
      %v233 = vld [vmem:[%s220 + $0x8] sm:$0xff]
      %v234 = vld [vmem:[%s220 + $0x10] sm:$0xff]
      %v235 = vld [vmem:[%s220 + $0x18] sm:$0xff]
      %v236 = vld [vmem:[%s223] sm:$0x1]
      %v238 = vlaneseq
      %v239 = vshrl.u32 %v238, 7
      %v240 = vsub.s32 0, %v239
      %v241 = vrot.slane %v236, %v240
      %vm243 = vcmask 261120
      %v245 = vsel %vm243, %v231, 0
      %247 = vmatprep.subr.mxu0 0.0
      %248 = vmatpush1.msra.mxu0 %v232
      %249 = vmatprep.subr.mxu0 0.0
      %250 = vmatpush1.msra.mxu0 %v233
      %251 = vmatprep.subr.mxu0 0.0
      %252 = vmatpush1.msra.mxu0 %v234
      %253 = vmatprep.subr.mxu0 0.0
      %254 = vmatpush1.msra.mxu0 %v235
      %255 = vmatprep.subr.mxu0 0.0
      %256 = vmatpush1.msra.mxu0 0.0
      %257 = vmatprep.subr.mxu0 0.0
      %258 = vmatpush1.msra.mxu0 0.0
      %259 = vmatprep.subr.mxu0 0.0
      %260 = vmatpush1.msra.mxu0 0.0
      %261 = vmatprep.subr.mxu0 0.0
      %262 = vmatpush1.msra.mxu0 0.0
      %263 = vmatprep.subr.mxu0 0.0
      %264 = vmatpush1.msra.mxu0 0.0
      %265 = vmatprep.subr.mxu0 0.0
      %266 = vmatpush1.msra.mxu0 0.0
      %267 = vmatprep.subr.mxu0 0.0
      %268 = vmatpush1.msra.mxu0 0.0
      %269 = vmatprep.subr.mxu0 0.0
      %270 = vmatpush1.msra.mxu0 0.0
      %271 = vmatprep.subr.mxu0 0.0
      %272 = vmatpush1.msra.mxu0 0.0
      %273 = vmatprep.subr.mxu0 0.0
      %274 = vmatpush1.msra.mxu0 0.0
      %275 = vmatprep.subr.mxu0 0.0
      %276 = vmatpush1.msra.mxu0 0.0
      %277 = vmatprep.subr.mxu0 0.0
      %278 = vmatpush1.msra.mxu0 0.0
      %279 = vmatprep.subr.mxu0 0.0
      %280 = vmatpush1.msra.mxu0 0.0
      %281 = vmatprep.subr.mxu0 0.0
      %282 = vmatpush1.msra.mxu0 0.0
      %283 = vmatprep.subr.mxu0 0.0
      %284 = vmatpush1.msra.mxu0 0.0
      %285 = vmatprep.subr.mxu0 0.0
      %286 = vmatpush1.msra.mxu0 0.0
      %287 = vmatprep.subr.mxu0 0.0
      %288 = vmatpush1.msra.mxu0 0.0
      %289 = vmatprep.subr.mxu0 0.0
      %290 = vmatpush1.msra.mxu0 0.0
      %291 = vmatprep.subr.mxu0 0.0
      %292 = vmatpush1.msra.mxu0 0.0
      %293 = vmatprep.subr.mxu0 0.0
      %294 = vmatpush1.msra.mxu0 0.0
      %295 = vmatprep.subr.mxu0 0.0
      %296 = vmatpush1.msra.mxu0 0.0
      %297 = vmatprep.subr.mxu0 0.0
      %298 = vmatpush1.msra.mxu0 0.0
      %299 = vmatprep.subr.mxu0 0.0
      %300 = vmatpush1.msra.mxu0 0.0
      %301 = vmatprep.subr.mxu0 0.0
      %302 = vmatpush1.msra.mxu0 0.0
      %303 = vmatprep.subr.mxu0 0.0
      %304 = vmatpush1.msra.mxu0 0.0
      %305 = vmatprep.subr.mxu0 0.0
      %306 = vmatpush1.msra.mxu0 0.0
      %307 = vmatprep.subr.mxu0 0.0
      %308 = vmatpush1.msra.mxu0 0.0
      %309 = vmatprep.subr.mxu0 0.0
      %310 = vmatpush1.msra.mxu0 0.0
      %311 = vmatprep.mubr.f32.mxu0 0.0
      %312 = vmatmul.mubr.f32.gmra.mrb[0].mxu0 %v245
      %v313 = vpop.f32.mrb[0].mxu0
      %v314 = vadd.f32 %v241, %v313
      %v315 = vpop.f32.mrb[0].mxu0
      %316 = vdwg.mxu0
      %317 = vst [vmem:[%s230] sm:$0xff] %v314
      %p318 = scmp.lt.s32.totalorder %s18, 5
      %s319 = scalar_select %p318, %s18, 5
      %p320 = scmp.lt.s32.totalorder %s19, 0
      %s321 = scalar_select %p320, %s19, 0
      %s322 = sadd.s32 %s321, %s319
      %s323 = smul.addr %s322, 8
      %s324 = scalar_lea.vmem %s3, %s323
      // Predicated region
      $region33: #{pcb_dense_head.1} parent=31 // pred_check
        %p325 = pneg %p126
      $region34: #{pcb_dense_head.1} parent=31 // pred_check_branch
        %327 = sbr.rel (%p325) target = $region36
      $region35: #{pcb_dense_head.1} parent=31 // pred_region
        _
      $region36: #{pcb_dense_head.1} parent=31 // pred_fallthru
        _
    $region32: #{pcb_dense_head.1} parent=5 // pred_fallthru
      _
    %p328 = scmp.le.s32.totalorder 2, %s9
    // Predicated region
    $region37: #{pcb_dense_head.1} parent=5 // pred_check
      %p329 = pneg %p328
    $region38: #{pcb_dense_head.1} parent=5 // pred_check_branch
      %331 = sbr.rel (%p329) target = $region40
    $region39: #{pcb_dense_head.1} parent=5 // pred_region
      %s332 = ssub.s32 %s9, 2
      // Predicated region
      $region41: #{pcb_dense_head.1} parent=39 // pred_check
        %p333 = pneg %p132
      $region42: #{pcb_dense_head.1} parent=39 // pred_check_branch
        %335 = sbr.rel (%p333) target = $region44
      $region43: #{pcb_dense_head.1} parent=39 // pred_region
        %p336 = scmp.lt.s32.totalorder %s20, 5
        %s337 = scalar_select %p336, %s20, 5
        %p338 = scmp.lt.s32.totalorder %s21, 0
        %s339 = scalar_select %p338, %s21, 0
        %s340 = sadd.s32 %s339, %s337
        %s341 = smul.addr %s340, 8
        %s342 = scalar_lea.vmem %s3, %s341
      $region44: #{pcb_dense_head.1} parent=39 // pred_fallthru
        _
    $region40: #{pcb_dense_head.1} parent=5 // pred_fallthru
      _
  $region6: #{pcb_dense_head.1} parent=0 // loop_footer
    %s13 = sadd.s32 1, %s9
  $region7: #{pcb_dense_head.1} parent=0 // loop_footer_branch
    %8 = sbr.rel target = $region3
  $region8: #{pcb_dense_head.1} parent=0 // loop_exit
    _

</llo_original>
